<compile_context>
chip_gen: v5e
topology: v5e:2x2
jax: 0.10.0
libtpu: 0.0.40
codegen_flags: <defaults>
</compile_context>

<pallas_src>
import functools

import jax
import jax.numpy as jnp
from jax.experimental import pallas as pl
from jax.experimental.pallas import tpu as pltpu


def _pld_kernel(scale_ref, bias_ref, x_ref, o_ref, *, repeat: bool):
    # scale_ref/bias_ref: (3,) f32 in SMEM (invert+normalize folded).
    # x_ref: (1, C_in, TR, L) VMEM tile; o_ref: (1, 3, TR, L) VMEM tile.
    for ci in range(3):
        src = 0 if repeat else ci                    # channel repeat == reuse ch 0
        v = x_ref[0, src].astype(jnp.float32)        # (TR, L), cast in-kernel
        o_ref[0, ci] = v * scale_ref[ci] + bias_ref[ci]


def _plane_factorization(hw: int):
    """Factor H*W into (rows, lanes) with lanes a multiple of 128 (lane-dense
    stores), preferring rows % 8 == 0 (fully dense (8,128) vreg tiles)."""
    best = None
    lanes = 128
    while lanes <= min(hw, 4096):
        if hw % lanes == 0:
            rows = hw // lanes
            score = (rows % 8 == 0, lanes)
            if best is None or score > best[0]:
                best = (score, rows, lanes)
        lanes += 128
    if best is not None:
        return best[1], best[2]
    return 1, hw  # H*W not a multiple of 128: single full-width row (full-dim block)


def _choose_row_tile(rows: int, lanes: int, max_block_bytes: int = 2 << 20):
    """Largest multiple-of-8 divisor of `rows` whose per-channel f32 block is
    <= max_block_bytes, so double-buffered in+3*out blocks stay well under the
    32 MiB scoped default / v7x's 64 MiB physical VMEM."""
    if rows * lanes * 4 <= max_block_bytes:
        return rows
    best = None
    for tr in range(8, rows + 1, 8):
        if rows % tr == 0 and tr * lanes * 4 <= max_block_bytes:
            best = tr
    return best if best is not None else rows


def process_line_drawing(x, mean, std, *, repeat=True, invert=True):
    """JAX/Pallas equivalent of ProcessLineDrawing.forward.

    x:    (N, 1, H, W) if repeat else (N, 3, H, W); float dtype, values in [0, 1]
          (cast to f32 inside the kernel -- no full-size f32 copy in HBM).
    mean: scalar or (3,) per-channel mean.
    std:  scalar or (3,) per-channel std.
    returns (N, 3, H, W) float32.
    """
    mean = jnp.asarray(mean, jnp.float32).reshape(-1)
    std = jnp.asarray(std, jnp.float32).reshape(-1)
    if mean.shape[0] == 1:
        mean = jnp.tile(mean, 3)
    if std.shape[0] == 1:
        std = jnp.tile(std, 3)
    assert mean.shape == (3,) and std.shape == (3,)

    # Fold invert + normalize into one affine per channel: out = x*scale + bias
    #   invert:    ((1 - x) - mean) / std = x*(-1/std) + (1 - mean)/std
    #   no invert:       (x - mean) / std = x*( 1/std) + (   - mean)/std
    inv_std = 1.0 / std
    scale = -inv_std if invert else inv_std
    bias = (1.0 - mean) * inv_std if invert else -mean * inv_std

    N, C_in, H, W = x.shape
    if repeat:
        assert C_in == 1, "repeat=True expects a single-channel input"
    else:
        assert C_in == 3, "repeat=False expects a 3-channel input"
    C_out = 3

    # Lane-dense spatial layout: view each contiguous plane as (rows, lanes).
    hw = H * W
    rows, lanes = _plane_factorization(hw)
    tr = _choose_row_tile(rows, lanes)
    x4 = x.reshape(N, C_in, rows, lanes)

    grid = (N, rows // tr)

    out = pl.pallas_call(
        functools.partial(_pld_kernel, repeat=repeat),
        out_shape=jax.ShapeDtypeStruct((N, C_out, rows, lanes), jnp.float32),
        grid=grid,
        in_specs=[
            pl.BlockSpec(memory_space=pltpu.MemorySpace.SMEM),  # scale (3,)
            pl.BlockSpec(memory_space=pltpu.MemorySpace.SMEM),  # bias  (3,)
            pl.BlockSpec((1, C_in, tr, lanes), lambda n, r: (n, 0, r, 0)),
        ],
        out_specs=pl.BlockSpec((1, C_out, tr, lanes), lambda n, r: (n, 0, r, 0)),
        compiler_params=pltpu.CompilerParams(
            # Both axes are independent -> shard across TensorCores on v7x.
            dimension_semantics=("parallel", "parallel"),
            vmem_limit_bytes=48 * 1024 * 1024,
        ),
    )(scale, bias, x4)

    return out.reshape(N, C_out, H, W)


def _reference(x, mean, std, *, repeat=True, invert=True):
    # Pure-JAX reference mirroring the PyTorch forward.
    x = x.astype(jnp.float32)
    if repeat:
        x = jnp.tile(x, (1, 3, 1, 1))
    if invert:
        x = 1.0 - x
    mean = jnp.asarray(mean, jnp.float32).reshape(1, 3, 1, 1)
    std = jnp.asarray(std, jnp.float32).reshape(1, 3, 1, 1)
    return (x - mean) / std


if __name__ == "__main__":
    key = jax.random.PRNGKey(0)
    k1, k2 = jax.random.split(key)

    # Deterministic "buffers" (module __init__ args), ImageNet-like values.
    mean = jnp.array([0.485, 0.456, 0.406], jnp.float32)
    std = jnp.array([0.229, 0.224, 0.225], jnp.float32)

    # repeat=True path: batch=2, single-channel line drawing, 16x16 spatial.
    x1 = jax.random.uniform(k1, (2, 1, 16, 16), dtype=jnp.float32)
    out1 = jax.block_until_ready(
        process_line_drawing(x1, mean, std, repeat=True, invert=True))
    ref1 = _reference(x1, mean, std, repeat=True, invert=True)
    assert out1.shape == (2, 3, 16, 16)
    assert jnp.allclose(out1, ref1, atol=1e-5, rtol=1e-5), "mismatch (repeat/invert)"

    # repeat=False / invert=False path: 3-channel input, plain normalize.
    x2 = jax.random.uniform(k2, (2, 3, 16, 16), dtype=jnp.float32)
    out2 = jax.block_until_ready(
        process_line_drawing(x2, mean, std, repeat=False, invert=False))
    ref2 = _reference(x2, mean, std, repeat=False, invert=False)
    assert out2.shape == (2, 3, 16, 16)
    assert jnp.allclose(out2, ref2, atol=1e-5, rtol=1e-5), "mismatch (no-repeat)"

    print("KERNEL_OK")
</pallas_src>

<mosaic_0001>
module attributes {stable_mosaic.version = 11 : i64} {
  func.func @_pld_kernel(%arg0: i32, %arg1: i32, %arg2: memref<3xf32, #tpu.memory_space<smem>>, %arg3: memref<3xf32, #tpu.memory_space<smem>>, %arg4: memref<1x1x1x256xf32, #tpu.memory_space<vmem>>, %arg5: memref<1x3x1x256xf32, #tpu.memory_space<vmem>>) attributes {dimension_semantics = [#tpu.dimension_semantics<parallel>, #tpu.dimension_semantics<parallel>], iteration_bounds = array<i64: 2, 1>, scalar_prefetch = 0 : i64, scratch_operands = 0 : i64, tpu.core_type = #tpu.core_type<tc>, window_params = [{transform_indices = @transform_0, window_bounds = array<i64: 3>}, {transform_indices = @transform_1, window_bounds = array<i64: 3>}, {transform_indices = @transform_2, window_bounds = array<i64: 1, 1, 1, 256>}, {transform_indices = @transform_3, window_bounds = array<i64: 1, 3, 1, 256>}]} {
    %c0 = arith.constant 0 : index
    %c0_0 = arith.constant 0 : index
    %c0_1 = arith.constant 0 : index
    %c0_2 = arith.constant 0 : index
    %0 = vector.load %arg4[%c0, %c0_0, %c0_1, %c0_2] : memref<1x1x1x256xf32, #tpu.memory_space<vmem>>, vector<1x1x1x256xf32>
    %1 = vector.shape_cast %0 : vector<1x1x1x256xf32> to vector<1x256xf32>
    %c0_3 = arith.constant 0 : index
    %2 = memref.load %arg2[%c0_3] : memref<3xf32, #tpu.memory_space<smem>>
    %3 = vector.broadcast %2 : f32 to vector<1x256xf32>
    %4 = arith.mulf %1, %3 : vector<1x256xf32>
    %c0_4 = arith.constant 0 : index
    %5 = memref.load %arg3[%c0_4] : memref<3xf32, #tpu.memory_space<smem>>
    %6 = vector.broadcast %5 : f32 to vector<1x256xf32>
    %7 = arith.addf %4, %6 : vector<1x256xf32>
    %c0_5 = arith.constant 0 : index
    %c0_6 = arith.constant 0 : index
    %c0_7 = arith.constant 0 : index
    %c0_8 = arith.constant 0 : index
    %8 = vector.load %arg5[%c0_5, %c0_6, %c0_7, %c0_8] : memref<1x3x1x256xf32, #tpu.memory_space<vmem>>, vector<1x1x1x256xf32>
    %9 = vector.shape_cast %8 : vector<1x1x1x256xf32> to vector<1x256xf32>
    %10 = vector.shape_cast %7 : vector<1x256xf32> to vector<1x1x1x256xf32>
    tpu.vector_store %arg5[%c0_5, %c0_6, %c0_7, %c0_8], %10 {strides = array<i32>} : memref<1x3x1x256xf32, #tpu.memory_space<vmem>>, vector<1x1x1x256xf32>,
    %c0_9 = arith.constant 0 : index
    %c0_10 = arith.constant 0 : index
    %c0_11 = arith.constant 0 : index
    %c0_12 = arith.constant 0 : index
    %11 = vector.load %arg4[%c0_9, %c0_10, %c0_11, %c0_12] : memref<1x1x1x256xf32, #tpu.memory_space<vmem>>, vector<1x1x1x256xf32>
    %12 = vector.shape_cast %11 : vector<1x1x1x256xf32> to vector<1x256xf32>
    %c1 = arith.constant 1 : index
    %13 = memref.load %arg2[%c1] : memref<3xf32, #tpu.memory_space<smem>>
    %14 = vector.broadcast %13 : f32 to vector<1x256xf32>
    %15 = arith.mulf %12, %14 : vector<1x256xf32>
    %c1_13 = arith.constant 1 : index
    %16 = memref.load %arg3[%c1_13] : memref<3xf32, #tpu.memory_space<smem>>
    %17 = vector.broadcast %16 : f32 to vector<1x256xf32>
    %18 = arith.addf %15, %17 : vector<1x256xf32>
    %c0_14 = arith.constant 0 : index
    %c1_15 = arith.constant 1 : index
    %c0_16 = arith.constant 0 : index
    %c0_17 = arith.constant 0 : index
    %19 = vector.load %arg5[%c0_14, %c1_15, %c0_16, %c0_17] : memref<1x3x1x256xf32, #tpu.memory_space<vmem>>, vector<1x1x1x256xf32>
    %20 = vector.shape_cast %19 : vector<1x1x1x256xf32> to vector<1x256xf32>
    %21 = vector.shape_cast %18 : vector<1x256xf32> to vector<1x1x1x256xf32>
    tpu.vector_store %arg5[%c0_14, %c1_15, %c0_16, %c0_17], %21 {strides = array<i32>} : memref<1x3x1x256xf32, #tpu.memory_space<vmem>>, vector<1x1x1x256xf32>,
    %c0_18 = arith.constant 0 : index
    %c0_19 = arith.constant 0 : index
    %c0_20 = arith.constant 0 : index
    %c0_21 = arith.constant 0 : index
    %22 = vector.load %arg4[%c0_18, %c0_19, %c0_20, %c0_21] : memref<1x1x1x256xf32, #tpu.memory_space<vmem>>, vector<1x1x1x256xf32>
    %23 = vector.shape_cast %22 : vector<1x1x1x256xf32> to vector<1x256xf32>
    %c2 = arith.constant 2 : index
    %24 = memref.load %arg2[%c2] : memref<3xf32, #tpu.memory_space<smem>>
    %25 = vector.broadcast %24 : f32 to vector<1x256xf32>
    %26 = arith.mulf %23, %25 : vector<1x256xf32>
    %c2_22 = arith.constant 2 : index
    %27 = memref.load %arg3[%c2_22] : memref<3xf32, #tpu.memory_space<smem>>
    %28 = vector.broadcast %27 : f32 to vector<1x256xf32>
    %29 = arith.addf %26, %28 : vector<1x256xf32>
    %c0_23 = arith.constant 0 : index
    %c2_24 = arith.constant 2 : index
    %c0_25 = arith.constant 0 : index
    %c0_26 = arith.constant 0 : index
    %30 = vector.load %arg5[%c0_23, %c2_24, %c0_25, %c0_26] : memref<1x3x1x256xf32, #tpu.memory_space<vmem>>, vector<1x1x1x256xf32>
    %31 = vector.shape_cast %30 : vector<1x1x1x256xf32> to vector<1x256xf32>
    %32 = vector.shape_cast %29 : vector<1x256xf32> to vector<1x1x1x256xf32>
    tpu.vector_store %arg5[%c0_23, %c2_24, %c0_25, %c0_26], %32 {strides = array<i32>} : memref<1x3x1x256xf32, #tpu.memory_space<vmem>>, vector<1x1x1x256xf32>,
    return
  }
  func.func @transform_0(%arg0: i32, %arg1: i32) -> i32 {
    %c0_i32 = arith.constant 0 : i32
    %c0_i32_0 = arith.constant 0 : i32
    return %c0_i32 : i32
  }
  func.func @transform_1(%arg0: i32, %arg1: i32) -> i32 {
    %c0_i32 = arith.constant 0 : i32
    %c0_i32_0 = arith.constant 0 : i32
    return %c0_i32 : i32
  }
  func.func @transform_2(%arg0: i32, %arg1: i32) -> (i32, i32, i32, i32) {
    %c0_i32 = arith.constant 0 : i32
    %c0_i32_0 = arith.constant 0 : i32
    %c0_i32_1 = arith.constant 0 : i32
    return %arg0, %c0_i32, %arg1, %c0_i32_0 : i32, i32, i32, i32
  }
  func.func @transform_3(%arg0: i32, %arg1: i32) -> (i32, i32, i32, i32) {
    %c0_i32 = arith.constant 0 : i32
    %c0_i32_0 = arith.constant 0 : i32
    %c0_i32_1 = arith.constant 0 : i32
    return %arg0, %c0_i32, %arg1, %c0_i32_0 : i32, i32, i32, i32
  }
}

</mosaic_0001>

<llo_original>
// kernel: tpu_custom_call.1
$region0: #{tpu_custom_call.1}
  #allocation0 [shape = 'u32[]', space=smem, size = 0x4, offset = 0x4, fixed_abs, tag = 'smem constant byte address 0x4 - core index']
  #allocation1 [shape = 'u32[72,128]{1,0:T(1,128)}', space=vmem, size = 0x9000, scoped, tag = 'internal scratch']
  %s0 = inlined_call_operand.hbm [shape: f32[3], index: 0, kind: input, shape index: {}]
  %s1 = inlined_call_operand.hbm [shape: f32[3], index: 1, kind: input, shape index: {}]
  %s2 = inlined_call_operand.hbm [shape: f32[2,1,1,256], index: 2, kind: input, shape index: {}]
  %s3 = inlined_call_operand.hbm [shape: f32[2,3,1,256], index: 3, kind: output, shape index: {}]
  %s4 = sld [smem:[#allocation0]]
  $region57: #{tpu_custom_call.1} parent=0
    _
  %s6 = ssub.s32 1, %s4
  %s7 = scalar_select 0, %s6, %s4
  $region1: #{tpu_custom_call.1} parent=0
    #allocation2 [shape = 'u8[512]{0}', space=smem, size = 0x200, scoped, tag = 'input window, operand 0, single buffered']
    #allocation3 [shape = 's32[2]{0}', space=sflag, size = 0x8, scoped, tag = 'scoped memory for tpu_custom_call.1']
    #allocation4 [shape = 's32[2]{0}', space=sflag, size = 0x8, scoped, tag = 'scoped memory for tpu_custom_call.1']
    #allocation5 [shape = 's32[2]{0}', space=sflag, size = 0x8, scoped, tag = 'scoped memory for tpu_custom_call.1']
    #allocation6 [shape = 'u8[512]{0}', space=smem, size = 0x200, scoped, tag = 'input window, operand 1, single buffered']
    #allocation7 [shape = 's32[1]{0}', space=sflag, size = 0x4, scoped, tag = 'scoped memory for tpu_custom_call.1']
    #allocation8 [shape = 'u8[2048]{0}', space=vmem, size = 0x800, scoped, tag = 'input window, operand 2']
    #allocation9 [shape = 'u8[6144]{0}', space=vmem, size = 0x1800, scoped, tag = 'output window, operand 0']
    %8 = vsyncpa [#allocation5], 0
    %9 = vsyncpa [#allocation7], 0
    %10 = vsyncpa [#allocation3], 0
    %s11 = scalar_lea.sflag [#allocation3], 1
    %12 = vsyncpa %s11, 0
    %13 = vsyncpa [#allocation4], 0
    %s14 = scalar_lea.sflag [#allocation4], 1
    %15 = vsyncpa %s14, 0
    loop: start=0, step=1, limit=4
    $region2: #{tpu_custom_call.1} parent=1 // loop_pre_header
      _
    $region3: #{tpu_custom_call.1} parent=1 // loop_header
      %s17 = sphi 0, %s21
      %p18 = scmp.ge.s32.totalorder %s17, 4
      %s24 = sphi 0, %s36
      %s25 = sphi 0, %s32
      %s26 = sphi 0, %s24
      %s27 = sphi 0, %s25
      %s28 = sphi 0, %s26
      %s29 = sphi 0, %s27
      %s37 = sphi 0, %s37
      %s39 = sphi 0, %s37
      %s40 = sphi 0, %s39
      %s54 = sphi 0, %s40
      %s58 = sphi 0, %s58
      %s60 = sphi 0, %s58
      %s61 = sphi 0, %s60
      %s75 = sphi 0, %s61
      %s83 = sphi 0, %s85
      %s86 = sphi 0, %s83
      %s87 = sphi 0, %s86
      %s103 = sphi 0, %s87
      %s111 = sphi 0, %s113
      %s114 = sphi 0, %s111
      %s115 = sphi 0, %s114
      %s131 = sphi 0, %s115
    $region4: #{tpu_custom_call.1} parent=1 // loop_header_branch
      %20 = sbr.rel (%p18) target = $region8
    $region5: #{tpu_custom_call.1} parent=1 // loop_body
      %s22 = ssub.s32 %s17, 1
      %s23 = ssub.s32 %s17, 2
      %s30 = sadd.s32 1, %s25
      %p31 = scmp.ge.s32.totalorder %s30, 1
      %s32 = scalar_select %p31, 0, %s30
      %s33 = sadd.s32 1, %s24
      %s34 = scalar_select %p31, %s33, %s24
      %p35 = scmp.ge.s32.totalorder %s34, 2
      %s36 = scalar_select %p35, 0, %s34
      %s38 = sadd.s32 %s37, 1
      %p41 = scmp.eq.s32.totalorder %s17, 1
      %p42 = scmp.ne.s32.totalorder %s37, %s39
      %p43 = scmp.eq.s32.totalorder %s17, 0
      %p44 = por %p42, %p43
      %p45 = scmp.ne.s32.totalorder %s37, %s39
      %p46 = scmp.eq.s32.totalorder %s22, 1
      %p47 = por %p45, %p46
      %p48 = scmp.ne.s32.totalorder %s39, %s40
      %p49 = scmp.eq.s32.totalorder %s22, 0
      %p50 = por %p48, %p49
      %p51 = scmp.ne.s32.totalorder %s39, %s40
      %p52 = scmp.eq.s32.totalorder %s23, 1
      %p53 = por %p51, %p52
      %p55 = scmp.ne.s32.totalorder %s40, %s54
      %p56 = scmp.eq.s32.totalorder %s23, 0
      %p57 = por %p55, %p56
      %s59 = sadd.s32 %s58, 1
      %p62 = scmp.eq.s32.totalorder %s17, 1
      %p63 = scmp.ne.s32.totalorder %s58, %s60
      %p64 = scmp.eq.s32.totalorder %s17, 0
      %p65 = por %p63, %p64
      %p66 = scmp.ne.s32.totalorder %s58, %s60
      %p67 = scmp.eq.s32.totalorder %s22, 1
      %p68 = por %p66, %p67
      %p69 = scmp.ne.s32.totalorder %s60, %s61
      %p70 = scmp.eq.s32.totalorder %s22, 0
      %p71 = por %p69, %p70
      %p72 = scmp.ne.s32.totalorder %s60, %s61
      %p73 = scmp.eq.s32.totalorder %s23, 1
      %p74 = por %p72, %p73
      %p76 = scmp.ne.s32.totalorder %s61, %s75
      %p77 = scmp.eq.s32.totalorder %s23, 0
      %p78 = por %p76, %p77
      %s79 = ssub.s32 %s24, %s36
      %s80 = ssub.s32 %s25, %s32
      %s81 = sor.u32 %s79, %s80
      %p82 = scmp.eq.s32.totalorder %s81, 0
      %s84 = sadd.s32 %s83, 1
      %s85 = scalar_select %p82, %s83, %s84
      %p88 = pneg %p82
      %p89 = scmp.eq.s32.totalorder %s17, 1
      %p90 = por %p88, %p89
      %p91 = scmp.ne.s32.totalorder %s83, %s86
      %p92 = scmp.eq.s32.totalorder %s17, 0
      %p93 = por %p91, %p92
      %p94 = scmp.ne.s32.totalorder %s83, %s86
      %p95 = scmp.eq.s32.totalorder %s22, 1
      %p96 = por %p94, %p95
      %p97 = scmp.ne.s32.totalorder %s86, %s87
      %p98 = scmp.eq.s32.totalorder %s22, 0
      %p99 = por %p97, %p98
      %p100 = scmp.ne.s32.totalorder %s86, %s87
      %p101 = scmp.eq.s32.totalorder %s23, 1
      %p102 = por %p100, %p101
      %p104 = scmp.ne.s32.totalorder %s87, %s103
      %p105 = scmp.eq.s32.totalorder %s23, 0
      %p106 = por %p104, %p105
      %s107 = ssub.s32 %s24, %s36
      %s108 = ssub.s32 %s25, %s32
      %s109 = sor.u32 %s107, %s108
      %p110 = scmp.eq.s32.totalorder %s109, 0
      %s112 = sadd.s32 %s111, 1
      %s113 = scalar_select %p110, %s111, %s112
      %p116 = pneg %p110
      %p117 = scmp.eq.s32.totalorder %s17, 1
      %p118 = por %p116, %p117
      %p119 = scmp.ne.s32.totalorder %s111, %s114
      %p120 = scmp.eq.s32.totalorder %s17, 0
      %p121 = por %p119, %p120
      %p122 = scmp.ne.s32.totalorder %s111, %s114
      %p123 = scmp.eq.s32.totalorder %s22, 1
      %p124 = por %p122, %p123
      %p125 = scmp.ne.s32.totalorder %s114, %s115
      %p126 = scmp.eq.s32.totalorder %s22, 0
      %p127 = por %p125, %p126
      %p128 = scmp.ne.s32.totalorder %s114, %s115
      %p129 = scmp.eq.s32.totalorder %s23, 1
      %p130 = por %p128, %p129
      %p132 = scmp.ne.s32.totalorder %s115, %s131
      %p133 = scmp.eq.s32.totalorder %s23, 0
      %p134 = por %p132, %p133
      %p135 = scmp.le.s32.totalorder 1, %s17
      %p136 = scmp.lt.s32.totalorder %s17, 3
      %p137 = pnand %p135, %p136
      %p138 = pneg %p137
      // Predicated region
      $region9: #{tpu_custom_call.1} parent=5 // pred_check
        _
      $region10: #{tpu_custom_call.1} parent=5 // pred_check_branch
        %140 = sbr.rel (%p137) target = $region12
      $region11: #{tpu_custom_call.1} parent=5 // pred_region
        %s141 = ssub.s32 %s17, 1
        // Predicated region
        $region13: #{tpu_custom_call.1} parent=11 // pred_check
          %p142 = pneg %p50
        $region14: #{tpu_custom_call.1} parent=11 // pred_check_branch
          %144 = sbr.rel (%p142) target = $region16
        $region15: #{tpu_custom_call.1} parent=11 // pred_region
          %146 = vsyncadd [#allocation5], 0
          %s148 = sshll.u32 %s0, 4
          %s149 = int_to_ptr.hbm [resolvable:$true] %s148
          %151 = dma.hbm_to_smem %s149, 16, [#allocation2], [#allocation5]
        $region16: #{tpu_custom_call.1} parent=11 // pred_fallthru
          _
        // Predicated region
        $region17: #{tpu_custom_call.1} parent=11 // pred_check
          %p152 = pneg %p71
        $region18: #{tpu_custom_call.1} parent=11 // pred_check_branch
          %154 = sbr.rel (%p152) target = $region20
        $region19: #{tpu_custom_call.1} parent=11 // pred_region
          %156 = vsyncadd [#allocation7], 0
          %s158 = sshll.u32 %s1, 4
          %s159 = int_to_ptr.hbm [resolvable:$true] %s158
          %161 = dma.hbm_to_smem %s159, 16, [#allocation6], [#allocation7]
        $region20: #{tpu_custom_call.1} parent=11 // pred_fallthru
          _
      $region12: #{tpu_custom_call.1} parent=5 // pred_fallthru
        _
      %p162 = scmp.lt.s32.totalorder %s17, 2
      // Predicated region
      $region21: #{tpu_custom_call.1} parent=5 // pred_check
        %p163 = pneg %p162
      $region22: #{tpu_custom_call.1} parent=5 // pred_check_branch
        %165 = sbr.rel (%p163) target = $region24
      $region23: #{tpu_custom_call.1} parent=5 // pred_region
        // Predicated region
        $region25: #{tpu_custom_call.1} parent=23 // pred_check
          %p166 = pneg %p93
        $region26: #{tpu_custom_call.1} parent=23 // pred_check_branch
          %168 = sbr.rel (%p166) target = $region28
        $region27: #{tpu_custom_call.1} parent=23 // pred_region
          %s169 = sand.u32 %s83, 1
          %s170 = scalar_lea.sflag [#allocation3], %s169
          %s171 = sand.u32 %s83, 1
          %s172 = smul.addr %s171, 2
          %s173 = scalar_lea.vmem [#allocation8], %s172
          %175 = vsyncadd %s170, 0
          %s176 = smul.addr %s25, 2
          %s177 = smul.addr %s24, 2
          %s178 = sadd.s32 %s176, %s177
          %s179 = scalar_lea.hbm %s2, %s178
          %s181 = sshll.u32 %s179, 4
          %s182 = int_to_ptr.hbm [resolvable:$true] %s181
          %s183 = sshll.u32 %s173, 4
          %s184 = int_to_ptr.vmem [resolvable:$true] %s183
          %186 = dma.hbm_to_vmem [thread:$0]  %s182, 32, %s184, %s170
        $region28: #{tpu_custom_call.1} parent=23 // pred_fallthru
          _
      $region24: #{tpu_custom_call.1} parent=5 // pred_fallthru
        _
      %p187 = scmp.le.s32.totalorder 1, %s17
      %p188 = scmp.lt.s32.totalorder %s17, 3
      %p189 = pnand %p187, %p188
      %p190 = pneg %p189
      // Predicated region
      $region29: #{tpu_custom_call.1} parent=5 // pred_check
        _
      $region30: #{tpu_custom_call.1} parent=5 // pred_check_branch
        %192 = sbr.rel (%p189) target = $region32
      $region31: #{tpu_custom_call.1} parent=5 // pred_region
        %s193 = ssub.s32 %s17, 1
        // Predicated region
        $region33: #{tpu_custom_call.1} parent=31 // pred_check
          %p194 = pneg %p50
        $region34: #{tpu_custom_call.1} parent=31 // pred_check_branch
          %196 = sbr.rel (%p194) target = $region36
        $region35: #{tpu_custom_call.1} parent=31 // pred_region
          %198 = dma.done [#allocation5], 16
        $region36: #{tpu_custom_call.1} parent=31 // pred_fallthru
          _
        // Predicated region
        $region37: #{tpu_custom_call.1} parent=31 // pred_check
          %p199 = pneg %p71
        $region38: #{tpu_custom_call.1} parent=31 // pred_check_branch
          %201 = sbr.rel (%p199) target = $region40
        $region39: #{tpu_custom_call.1} parent=31 // pred_region
          %203 = dma.done [#allocation7], 16
        $region40: #{tpu_custom_call.1} parent=31 // pred_fallthru
          _
        %s204 = sand.u32 %s86, 1
        %s205 = scalar_lea.sflag [#allocation3], %s204
        %s206 = sand.u32 %s86, 1
        %s207 = smul.addr %s206, 2
        %s208 = scalar_lea.vmem [#allocation8], %s207
        // Predicated region
        $region41: #{tpu_custom_call.1} parent=31 // pred_check
          %p209 = pneg %p99
        $region42: #{tpu_custom_call.1} parent=31 // pred_check_branch
          %211 = sbr.rel (%p209) target = $region44
        $region43: #{tpu_custom_call.1} parent=31 // pred_region
          %213 = dma.done %s205, 32
        $region44: #{tpu_custom_call.1} parent=31 // pred_fallthru
          _
        %214 = sfence
        %p215 = pneg %p50
        %p216 = pneg %p47
        %p217 = pneg %p71
        %p218 = pneg %p68
        %s219 = sand.u32 %s86, 1
        %s220 = scalar_lea.sflag [#allocation3], %s219
        %s221 = sand.u32 %s86, 1
        %s222 = smul.addr %s221, 2
        %s223 = scalar_lea.vmem [#allocation8], %s222
        %p224 = pneg %p99
        %p225 = pneg %p96
        %p226 = pneg %p127
        %p227 = pneg %p124
        %s228 = sand.u32 %s114, 1
        %s229 = scalar_lea.sflag [#allocation4], %s228
        %s230 = sand.u32 %s114, 1
        %s231 = smul.addr %s230, 6
        %s232 = scalar_lea.vmem [#allocation9], %s231
        %v233 = vld [vmem:[%s208] sm:$0x3]
        %s234 = sld [smem:[#allocation2]]
        %v235 = vstv %s234
        %v236 = vmul.f32 %v233, %v235
        %s237 = sld [smem:[#allocation6]]
        %v238 = vstv %s237
        %v239 = vadd.f32 %v236, %v238
        %v240 = vlaneseq
        %vm241 = vcmp.ge.s32.totalorder %v240, 0
        %vm242 = vcmp.lt.s32.totalorder %v240, 256
        %vm243 = vmand %vm241, %vm242
        %244 = vst.msk [vmem:[%s232] sm:$0x3] %vm243, %v239
        %v245 = vld [vmem:[%s208] sm:$0x3]
        %s246 = sld [smem:[#allocation2 + $0x1]]
        %v247 = vstv %s246
        %v248 = vmul.f32 %v245, %v247
        %s249 = sld [smem:[#allocation6 + $0x1]]
        %v250 = vstv %s249
        %v251 = vadd.f32 %v248, %v250
        %s252 = scalar_lea.vmem %s232, 2 [#allocation9]
        %253 = vst.msk [vmem:[%s252] sm:$0x3] %vm243, %v251
        %v254 = vld [vmem:[%s208] sm:$0x3]
        %s255 = sld [smem:[#allocation2 + $0x2]]
        %v256 = vstv %s255
        %v257 = vmul.f32 %v254, %v256
        %s258 = sld [smem:[#allocation6 + $0x2]]
        %v259 = vstv %s258
        %v260 = vadd.f32 %v257, %v259
        %s261 = scalar_lea.vmem %s232, 4 [#allocation9]
        %262 = vst.msk [vmem:[%s261] sm:$0x3] %vm243, %v260
        %s263 = sand.u32 %s114, 1
        %s264 = scalar_lea.sflag [#allocation4], %s263
        %s265 = sand.u32 %s114, 1
        %s266 = smul.addr %s265, 6
        %s267 = scalar_lea.vmem [#allocation9], %s266
        // Predicated region
        $region45: #{tpu_custom_call.1} parent=31 // pred_check
          %p268 = pneg %p124
        $region46: #{tpu_custom_call.1} parent=31 // pred_check_branch
          %270 = sbr.rel (%p268) target = $region48
        $region47: #{tpu_custom_call.1} parent=31 // pred_region
          %272 = vsyncadd %s264, 0
          %s273 = smul.addr %s27, 2
          %s274 = smul.addr %s26, 6
          %s275 = sadd.s32 %s273, %s274
          %s276 = scalar_lea.hbm %s3, %s275
          %s277 = sshll.u32 %s267, 4
          %s278 = int_to_ptr.vmem [resolvable:$true] %s277
          %s279 = sshll.u32 %s276, 4
          %s280 = int_to_ptr.hbm [resolvable:$true] %s279
          %285 = dma.vmem_to_hbm [thread:$0]  %s278, 96, %s280, %s264, 32, 32, 2
        $region48: #{tpu_custom_call.1} parent=31 // pred_fallthru
          _
      $region32: #{tpu_custom_call.1} parent=5 // pred_fallthru
        _
      %p286 = scmp.le.s32.totalorder 2, %s17
      // Predicated region
      $region49: #{tpu_custom_call.1} parent=5 // pred_check
        %p287 = pneg %p286
      $region50: #{tpu_custom_call.1} parent=5 // pred_check_branch
        %289 = sbr.rel (%p287) target = $region52
      $region51: #{tpu_custom_call.1} parent=5 // pred_region
        %s290 = ssub.s32 %s17, 2
        // Predicated region
        $region53: #{tpu_custom_call.1} parent=51 // pred_check
          %p291 = pneg %p130
        $region54: #{tpu_custom_call.1} parent=51 // pred_check_branch
          %293 = sbr.rel (%p291) target = $region56
        $region55: #{tpu_custom_call.1} parent=51 // pred_region
          %s294 = sand.u32 %s115, 1
          %s295 = scalar_lea.sflag [#allocation4], %s294
          %s296 = sand.u32 %s115, 1
          %s297 = smul.addr %s296, 6
          %s298 = scalar_lea.vmem [#allocation9], %s297
          %300 = dma.done %s295, 96
        $region56: #{tpu_custom_call.1} parent=51 // pred_fallthru
          _
      $region52: #{tpu_custom_call.1} parent=5 // pred_fallthru
        _
    $region6: #{tpu_custom_call.1} parent=1 // loop_footer
      %s21 = sadd.s32 1, %s17
    $region7: #{tpu_custom_call.1} parent=1 // loop_footer_branch
      %16 = sbr.rel target = $region3
    $region8: #{tpu_custom_call.1} parent=1 // loop_exit
      _
    %301 = vsyncpa [#allocation3], 1
    %s302 = scalar_lea.sflag [#allocation3], 1
    %303 = vsyncpa %s302, 1
    %304 = vsyncpa [#allocation4], 1
    %s305 = scalar_lea.sflag [#allocation4], 1
    %306 = vsyncpa %s305, 1
    %307 = vsyncpa [#allocation5], 1
    %s308 = scalar_lea.sflag [#allocation5], 1
    %309 = vsyncpa %s308, 1
    %310 = vsyncpa [#allocation7], 1

</llo_original>
